<compile_context>
chip_gen: v5e
topology: v5e:2x2
jax: 0.10.0
libtpu: 0.0.40
codegen_flags: <defaults>
</compile_context>

<pallas_src>
import functools

import jax
import jax.numpy as jnp
from jax.experimental import pallas as pl
from jax.experimental.pallas import tpu as pltpu

LANE = 128
_SMOOTH = 1e-5


def _dice_partial_kernel(score_ref, lab_ref, out_ref, *,
                         n_classes, hw, block_rows, softmax):
    """One (batch, row-chunk) grid step.

    score_ref : (1, C, TR, 128) f32   -- all class scores for this pixel chunk
    lab_ref   : (1, TR, 128)    int32 -- labels for this pixel chunk (read once)
    out_ref   : (1, 1, 3*C, 128) f32  -- lane-resolved partial sums:
                rows [0,C)   = intersect_c partials (sum over sublanes only)
                rows [C,2C)  = y_sum_c partials
                rows [2C,3C) = z_sum_c partials
    """
    k = pl.program_id(1)

    x = score_ref[0]                 # (C, TR, 128) f32
    lab = lab_ref[0]                 # (TR, 128)    int32

    need_mask = (hw % (block_rows * LANE)) != 0   # static Python decision
    if need_mask:
        row_ids = jax.lax.broadcasted_iota(jnp.int32, (block_rows, LANE), 0)
        lane_ids = jax.lax.broadcasted_iota(jnp.int32, (block_rows, LANE), 1)
        pix = (k * block_rows + row_ids) * LANE + lane_ids
        valid = pix < hw
        lab = jnp.where(valid, lab, -1)           # padding never matches a class

    if softmax:
        # Fused channel softmax: per-pixel over the C planes already in VMEM.
        xm = jnp.max(x, axis=0, keepdims=True)
        ex = jnp.exp(x - xm)
        x = ex * (1.0 / jnp.sum(ex, axis=0, keepdims=True))

    if need_mask:
        # Zero padded pixels so z_sum / intersect see no garbage contributions.
        x = jnp.where(valid[None, :, :], x, 0.0)

    inter_rows, ysum_rows, zsum_rows = [], [], []
    for c in range(n_classes):       # static unroll, C is small
        s_c = x[c]                                   # (TR, 128)
        t_c = lab == c                               # one-hot slice, built on the fly
        inter_rows.append(jnp.sum(jnp.where(t_c, s_c, 0.0), axis=0, keepdims=True))
        ysum_rows.append(jnp.sum(jnp.where(t_c, 1.0, 0.0), axis=0, keepdims=True))
        zsum_rows.append(jnp.sum(s_c * s_c, axis=0, keepdims=True))

    out = jnp.concatenate(inter_rows + ysum_rows + zsum_rows, axis=0)   # (3*C, 128)
    out_ref[...] = out[None, None]                                      # (1,1,3*C,128)


@functools.partial(jax.jit, static_argnames=("n_classes", "softmax"))
def dice_loss_pallas(inputs, target, n_classes, weight=None, softmax=False):
    """Pallas TPU implementation of DiceLoss.forward."""
    B, C, H, W = inputs.shape
    assert C == n_classes, "channel dim must equal n_classes"
    HW = H * W

    # Free reshapes only (row-major splits); no transpose, no score round trip.
    x = inputs.reshape(B, C, HW).astype(jnp.float32)
    lab = target.reshape(B, HW).astype(jnp.int32)

    hw_pad = pl.cdiv(HW, LANE) * LANE
    if hw_pad != HW:
        # TODO(synk): H*W not a multiple of 128 uses a small host-side pad; the
        # in-kernel pixel mask still guarantees exact results.
        x = jnp.pad(x, ((0, 0), (0, 0), (0, hw_pad - HW)))
        lab = jnp.pad(lab, ((0, 0), (0, hw_pad - HW)), constant_values=-1)

    rows = hw_pad // LANE
    x = x.reshape(B, C, rows, LANE)
    lab = lab.reshape(B, rows, LANE)

    # Chunk size: ~2 MiB of scores (all classes) per grid step; rows are a multiple
    # of 8 (or the full extent).  Double-buffered this stays well inside every
    # generation's scoped-VMEM budget (v5e/v6e/v7x).
    target_rows = max(8, ((2 * 1024 * 1024) // (n_classes * LANE * 4)) // 8 * 8)
    tr = min(rows, target_rows)
    n_chunks = pl.cdiv(rows, tr)

    kernel = functools.partial(_dice_partial_kernel, n_classes=n_classes, hw=HW,
                               block_rows=tr, softmax=softmax)

    nstat = 3 * n_classes
    part_shape = jax.ShapeDtypeStruct((B, n_chunks, nstat, LANE), jnp.float32)
    part_spec = pl.BlockSpec((1, 1, nstat, LANE), lambda b, k: (b, k, 0, 0))

    parts = pl.pallas_call(
        kernel,
        out_shape=part_shape,
        grid_spec=pltpu.PrefetchScalarGridSpec(
            num_scalar_prefetch=0,
            grid=(B, n_chunks),
            in_specs=[
                pl.BlockSpec((1, C, tr, LANE), lambda b, k: (b, 0, k, 0)),  # scores
                pl.BlockSpec((1, tr, LANE), lambda b, k: (b, k, 0)),        # labels
            ],
            out_specs=part_spec,
        ),
        compiler_params=pltpu.CompilerParams(
            dimension_semantics=("parallel", "parallel"),
            vmem_limit_bytes=32 * 1024 * 1024),
    )(x, lab)

    # Finish the reduction + dice formula on the tiny (B, n_chunks, 3C, 128) partials.
    totals = jnp.sum(parts, axis=(0, 1, 3))          # (3*C,)
    inter = totals[:n_classes]
    ysum = totals[n_classes:2 * n_classes]
    zsum = totals[2 * n_classes:]

    if weight is None:
        weight = [1.0] * n_classes
    weight = jnp.asarray(weight, jnp.float32).reshape(n_classes)

    dice = 1.0 - (2.0 * inter + _SMOOTH) / (zsum + ysum + _SMOOTH)
    return jnp.sum(dice * weight) / n_classes


def dice_loss_ref(inputs, target, n_classes, weight=None, softmax=False):
    """Pure-JAX reference reproducing the PyTorch DiceLoss.forward exactly."""
    if softmax:
        inputs = jax.nn.softmax(inputs, axis=1)
    one_hot = jax.nn.one_hot(target.astype(jnp.int32), n_classes,
                             axis=1, dtype=jnp.float32)
    if weight is None:
        weight = [1.0] * n_classes
    loss = 0.0
    for i in range(n_classes):
        s = inputs[:, i].astype(jnp.float32)
        t = one_hot[:, i]
        intersect = jnp.sum(s * t)
        y_sum = jnp.sum(t * t)
        z_sum = jnp.sum(s * s)
        dice = 1.0 - (2.0 * intersect + _SMOOTH) / (z_sum + y_sum + _SMOOTH)
        loss = loss + dice * weight[i]
    return loss / n_classes


if __name__ == "__main__":
    key = jax.random.PRNGKey(0)

    # Case 1: logits in, softmax fused in-kernel, default weights.
    B, C, H, W = 2, 4, 16, 16
    k1, k2 = jax.random.split(key)
    logits = jax.random.normal(k1, (B, C, H, W), dtype=jnp.float32)
    target = jax.random.randint(k2, (B, H, W), 0, C, dtype=jnp.int32)

    loss = jax.block_until_ready(dice_loss_pallas(logits, target, C, softmax=True))
    ref = dice_loss_ref(logits, target, C, softmax=True)
    assert jnp.allclose(loss, ref, rtol=1e-5, atol=1e-5), (loss, ref)

    # Case 2: probabilities in, explicit class weights, softmax=False.
    probs = jax.nn.softmax(logits, axis=1)
    w = [0.5, 1.0, 2.0, 1.5]
    loss2 = jax.block_until_ready(
        dice_loss_pallas(probs, target, C, weight=jnp.asarray(w, jnp.float32),
                         softmax=False))
    ref2 = dice_loss_ref(probs, target, C, weight=w, softmax=False)
    assert jnp.allclose(loss2, ref2, rtol=1e-5, atol=1e-5), (loss2, ref2)

    # Case 3: ragged spatial size (H*W not a multiple of 128) exercises the mask path.
    B3, C3, H3, W3 = 2, 3, 10, 12
    k3, k4 = jax.random.split(k1)
    logits3 = jax.random.normal(k3, (B3, C3, H3, W3), dtype=jnp.float32)
    target3 = jax.random.randint(k4, (B3, H3, W3), 0, C3, dtype=jnp.int32)
    loss3 = jax.block_until_ready(dice_loss_pallas(logits3, target3, C3, softmax=True))
    ref3 = dice_loss_ref(logits3, target3, C3, softmax=True)
    assert jnp.allclose(loss3, ref3, rtol=1e-5, atol=1e-5), (loss3, ref3)

    print("KERNEL_OK")
</pallas_src>

<mosaic_0001>
module attributes {stable_mosaic.version = 11 : i64} {
  func.func @_dice_partial_kernel(%arg0: i32, %arg1: i32, %arg2: memref<1x4x2x128xf32, #tpu.memory_space<vmem>>, %arg3: memref<1x2x128xi32, #tpu.memory_space<vmem>>, %arg4: memref<1x1x12x128xf32, #tpu.memory_space<vmem>>) attributes {dimension_semantics = [#tpu.dimension_semantics<parallel>, #tpu.dimension_semantics<parallel>], iteration_bounds = array<i64: 2, 1>, scalar_prefetch = 0 : i64, scratch_operands = 0 : i64, tpu.core_type = #tpu.core_type<tc>, window_params = [{transform_indices = @transform_0, window_bounds = array<i64: 1, 4, 2, 128>}, {transform_indices = @transform_1, window_bounds = array<i64: 1, 2, 128>}, {transform_indices = @transform_2, window_bounds = array<i64: 1, 1, 12, 128>}]} {
    %c0 = arith.constant 0 : index
    %c0_0 = arith.constant 0 : index
    %c0_1 = arith.constant 0 : index
    %c0_2 = arith.constant 0 : index
    %0 = vector.load %arg2[%c0, %c0_0, %c0_1, %c0_2] : memref<1x4x2x128xf32, #tpu.memory_space<vmem>>, vector<1x4x2x128xf32>
    %1 = vector.shape_cast %0 : vector<1x4x2x128xf32> to vector<4x2x128xf32>
    %c0_3 = arith.constant 0 : index
    %c0_4 = arith.constant 0 : index
    %c0_5 = arith.constant 0 : index
    %2 = vector.load %arg3[%c0_3, %c0_4, %c0_5] : memref<1x2x128xi32, #tpu.memory_space<vmem>>, vector<1x2x128xi32>
    %3 = vector.shape_cast %2 : vector<1x2x128xi32> to vector<2x128xi32>
    %cst = arith.constant dense<0xFF800000> : vector<2x128xf32>
    %4 = vector.multi_reduction <maximumf>, %1, %cst [0] : vector<4x2x128xf32> to vector<2x128xf32>
    %5 = vector.shape_cast %4 : vector<2x128xf32> to vector<1x2x128xf32>
    %6 = vector.broadcast %5 : vector<1x2x128xf32> to vector<4x2x128xf32>
    %7 = arith.subf %1, %6 : vector<4x2x128xf32>
    %8 = math.exp %7 : vector<4x2x128xf32>
    %cst_6 = arith.constant dense<0.000000e+00> : vector<2x128xf32>
    %9 = vector.multi_reduction <add>, %8, %cst_6 [0] : vector<4x2x128xf32> to vector<2x128xf32>
    %10 = vector.shape_cast %9 : vector<2x128xf32> to vector<1x2x128xf32>
    %cst_7 = arith.constant 1.000000e+00 : f32
    %11 = vector.broadcast %cst_7 : f32 to vector<1x2x128xf32>
    %12 = arith.divf %11, %10 : vector<1x2x128xf32>
    %13 = vector.broadcast %12 : vector<1x2x128xf32> to vector<4x2x128xf32>
    %14 = arith.mulf %8, %13 : vector<4x2x128xf32>
    %15 = vector.extract_strided_slice %14 {offsets = [0, 0, 0], sizes = [1, 2, 128], strides = [1, 1, 1]} : vector<4x2x128xf32> to vector<1x2x128xf32>
    %16 = vector.shape_cast %15 : vector<1x2x128xf32> to vector<2x128xf32>
    %c0_i32 = arith.constant 0 : i32
    %17 = vector.broadcast %c0_i32 : i32 to vector<2x128xi32>
    %18 = arith.cmpi eq, %3, %17 : vector<2x128xi32>
    %cst_8 = arith.constant 0.000000e+00 : f32
    %19 = vector.broadcast %cst_8 : f32 to vector<2x128xf32>
    %20 = arith.select %18, %16, %19 : vector<2x128xi1>, vector<2x128xf32>
    %cst_9 = arith.constant dense<0.000000e+00> : vector<128xf32>
    %21 = vector.multi_reduction <add>, %20, %cst_9 [0] : vector<2x128xf32> to vector<128xf32>
    %22 = vector.shape_cast %21 : vector<128xf32> to vector<1x128xf32>
    %cst_10 = arith.constant 1.000000e+00 : f32
    %cst_11 = arith.constant 0.000000e+00 : f32
    %23 = vector.broadcast %cst_10 : f32 to vector<2x128xf32>
    %24 = vector.broadcast %cst_11 : f32 to vector<2x128xf32>
    %25 = arith.select %18, %23, %24 : vector<2x128xi1>, vector<2x128xf32>
    %cst_12 = arith.constant dense<0.000000e+00> : vector<128xf32>
    %26 = vector.multi_reduction <add>, %25, %cst_12 [0] : vector<2x128xf32> to vector<128xf32>
    %27 = vector.shape_cast %26 : vector<128xf32> to vector<1x128xf32>
    %28 = arith.mulf %16, %16 : vector<2x128xf32>
    %cst_13 = arith.constant dense<0.000000e+00> : vector<128xf32>
    %29 = vector.multi_reduction <add>, %28, %cst_13 [0] : vector<2x128xf32> to vector<128xf32>
    %30 = vector.shape_cast %29 : vector<128xf32> to vector<1x128xf32>
    %31 = vector.extract_strided_slice %14 {offsets = [1, 0, 0], sizes = [1, 2, 128], strides = [1, 1, 1]} : vector<4x2x128xf32> to vector<1x2x128xf32>
    %32 = vector.shape_cast %31 : vector<1x2x128xf32> to vector<2x128xf32>
    %c1_i32 = arith.constant 1 : i32
    %33 = vector.broadcast %c1_i32 : i32 to vector<2x128xi32>
    %34 = arith.cmpi eq, %3, %33 : vector<2x128xi32>
    %cst_14 = arith.constant 0.000000e+00 : f32
    %35 = vector.broadcast %cst_14 : f32 to vector<2x128xf32>
    %36 = arith.select %34, %32, %35 : vector<2x128xi1>, vector<2x128xf32>
    %cst_15 = arith.constant dense<0.000000e+00> : vector<128xf32>
    %37 = vector.multi_reduction <add>, %36, %cst_15 [0] : vector<2x128xf32> to vector<128xf32>
    %38 = vector.shape_cast %37 : vector<128xf32> to vector<1x128xf32>
    %cst_16 = arith.constant 1.000000e+00 : f32
    %cst_17 = arith.constant 0.000000e+00 : f32
    %39 = vector.broadcast %cst_16 : f32 to vector<2x128xf32>
    %40 = vector.broadcast %cst_17 : f32 to vector<2x128xf32>
    %41 = arith.select %34, %39, %40 : vector<2x128xi1>, vector<2x128xf32>
    %cst_18 = arith.constant dense<0.000000e+00> : vector<128xf32>
    %42 = vector.multi_reduction <add>, %41, %cst_18 [0] : vector<2x128xf32> to vector<128xf32>
    %43 = vector.shape_cast %42 : vector<128xf32> to vector<1x128xf32>
    %44 = arith.mulf %32, %32 : vector<2x128xf32>
    %cst_19 = arith.constant dense<0.000000e+00> : vector<128xf32>
    %45 = vector.multi_reduction <add>, %44, %cst_19 [0] : vector<2x128xf32> to vector<128xf32>
    %46 = vector.shape_cast %45 : vector<128xf32> to vector<1x128xf32>
    %47 = vector.extract_strided_slice %14 {offsets = [2, 0, 0], sizes = [1, 2, 128], strides = [1, 1, 1]} : vector<4x2x128xf32> to vector<1x2x128xf32>
    %48 = vector.shape_cast %47 : vector<1x2x128xf32> to vector<2x128xf32>
    %c2_i32 = arith.constant 2 : i32
    %49 = vector.broadcast %c2_i32 : i32 to vector<2x128xi32>
    %50 = arith.cmpi eq, %3, %49 : vector<2x128xi32>
    %cst_20 = arith.constant 0.000000e+00 : f32
    %51 = vector.broadcast %cst_20 : f32 to vector<2x128xf32>
    %52 = arith.select %50, %48, %51 : vector<2x128xi1>, vector<2x128xf32>
    %cst_21 = arith.constant dense<0.000000e+00> : vector<128xf32>
    %53 = vector.multi_reduction <add>, %52, %cst_21 [0] : vector<2x128xf32> to vector<128xf32>
    %54 = vector.shape_cast %53 : vector<128xf32> to vector<1x128xf32>
    %cst_22 = arith.constant 1.000000e+00 : f32
    %cst_23 = arith.constant 0.000000e+00 : f32
    %55 = vector.broadcast %cst_22 : f32 to vector<2x128xf32>
    %56 = vector.broadcast %cst_23 : f32 to vector<2x128xf32>
    %57 = arith.select %50, %55, %56 : vector<2x128xi1>, vector<2x128xf32>
    %cst_24 = arith.constant dense<0.000000e+00> : vector<128xf32>
    %58 = vector.multi_reduction <add>, %57, %cst_24 [0] : vector<2x128xf32> to vector<128xf32>
    %59 = vector.shape_cast %58 : vector<128xf32> to vector<1x128xf32>
    %60 = arith.mulf %48, %48 : vector<2x128xf32>
    %cst_25 = arith.constant dense<0.000000e+00> : vector<128xf32>
    %61 = vector.multi_reduction <add>, %60, %cst_25 [0] : vector<2x128xf32> to vector<128xf32>
    %62 = vector.shape_cast %61 : vector<128xf32> to vector<1x128xf32>
    %63 = vector.extract_strided_slice %14 {offsets = [3, 0, 0], sizes = [1, 2, 128], strides = [1, 1, 1]} : vector<4x2x128xf32> to vector<1x2x128xf32>
    %64 = vector.shape_cast %63 : vector<1x2x128xf32> to vector<2x128xf32>
    %c3_i32 = arith.constant 3 : i32
    %65 = vector.broadcast %c3_i32 : i32 to vector<2x128xi32>
    %66 = arith.cmpi eq, %3, %65 : vector<2x128xi32>
    %cst_26 = arith.constant 0.000000e+00 : f32
    %67 = vector.broadcast %cst_26 : f32 to vector<2x128xf32>
    %68 = arith.select %66, %64, %67 : vector<2x128xi1>, vector<2x128xf32>
    %cst_27 = arith.constant dense<0.000000e+00> : vector<128xf32>
    %69 = vector.multi_reduction <add>, %68, %cst_27 [0] : vector<2x128xf32> to vector<128xf32>
    %70 = vector.shape_cast %69 : vector<128xf32> to vector<1x128xf32>
    %cst_28 = arith.constant 1.000000e+00 : f32
    %cst_29 = arith.constant 0.000000e+00 : f32
    %71 = vector.broadcast %cst_28 : f32 to vector<2x128xf32>
    %72 = vector.broadcast %cst_29 : f32 to vector<2x128xf32>
    %73 = arith.select %66, %71, %72 : vector<2x128xi1>, vector<2x128xf32>
    %cst_30 = arith.constant dense<0.000000e+00> : vector<128xf32>
    %74 = vector.multi_reduction <add>, %73, %cst_30 [0] : vector<2x128xf32> to vector<128xf32>
    %75 = vector.shape_cast %74 : vector<128xf32> to vector<1x128xf32>
    %76 = arith.mulf %64, %64 : vector<2x128xf32>
    %cst_31 = arith.constant dense<0.000000e+00> : vector<128xf32>
    %77 = vector.multi_reduction <add>, %76, %cst_31 [0] : vector<2x128xf32> to vector<128xf32>
    %78 = vector.shape_cast %77 : vector<128xf32> to vector<1x128xf32>
    %79 = tpu.concatenate %22, %38, %54, %70, %27, %43, %59, %75, %30, %46, %62, %78 in 0 : vector<1x128xf32>, vector<1x128xf32>, vector<1x128xf32>, vector<1x128xf32>, vector<1x128xf32>, vector<1x128xf32>, vector<1x128xf32>, vector<1x128xf32>, vector<1x128xf32>, vector<1x128xf32>, vector<1x128xf32>, vector<1x128xf32> -> vector<12x128xf32>
    %80 = vector.shape_cast %79 : vector<12x128xf32> to vector<1x1x12x128xf32>
    %c0_32 = arith.constant 0 : index
    %c0_33 = arith.constant 0 : index
    %c0_34 = arith.constant 0 : index
    %c0_35 = arith.constant 0 : index
    %81 = vector.load %arg4[%c0_32, %c0_33, %c0_34, %c0_35] : memref<1x1x12x128xf32, #tpu.memory_space<vmem>>, vector<1x1x12x128xf32>
    tpu.vector_store %arg4[%c0_32, %c0_33, %c0_34, %c0_35], %80 {strides = array<i32>} : memref<1x1x12x128xf32, #tpu.memory_space<vmem>>, vector<1x1x12x128xf32>,
    return
  }
  func.func @transform_0(%arg0: i32, %arg1: i32) -> (i32, i32, i32, i32) {
    %c0_i32 = arith.constant 0 : i32
    %c0_i32_0 = arith.constant 0 : i32
    %c0_i32_1 = arith.constant 0 : i32
    return %arg0, %c0_i32, %arg1, %c0_i32_0 : i32, i32, i32, i32
  }
  func.func @transform_1(%arg0: i32, %arg1: i32) -> (i32, i32, i32) {
    %c0_i32 = arith.constant 0 : i32
    %c0_i32_0 = arith.constant 0 : i32
    return %arg0, %arg1, %c0_i32 : i32, i32, i32
  }
  func.func @transform_2(%arg0: i32, %arg1: i32) -> (i32, i32, i32, i32) {
    %c0_i32 = arith.constant 0 : i32
    %c0_i32_0 = arith.constant 0 : i32
    %c0_i32_1 = arith.constant 0 : i32
    return %arg0, %arg1, %c0_i32, %c0_i32_0 : i32, i32, i32, i32
  }
}

</mosaic_0001>

<llo_original>
// kernel: dice_loss_pallas.1
$region0: #{dice_loss_pallas.1}
  #allocation0 [shape = 'u32[]', space=smem, size = 0x4, offset = 0x4, fixed_abs, tag = 'smem constant byte address 0x4 - core index']
  #allocation1 [shape = 'u32[72,128]{1,0:T(1,128)}', space=vmem, size = 0x9000, scoped, tag = 'internal scratch']
  %s0 = inlined_call_operand.vmem [shape: f32[2,4,2,128], index: 0, kind: input, shape index: {}]
  %s1 = inlined_call_operand.vmem [shape: s32[2,2,128], index: 1, kind: input, shape index: {}]
  %s2 = inlined_call_operand.vmem [shape: f32[2,1,12,128], index: 2, kind: output, shape index: {}]
  %s3 = sld [smem:[#allocation0]]
  $region41: #{dice_loss_pallas.1} parent=0
    _
  %s5 = ssub.s32 1, %s3
  %s6 = scalar_select 0, %s5, %s3
  loop: start=0, step=1, limit=4
  $region2: #{dice_loss_pallas.1} parent=0 // loop_pre_header
    _
  $region3: #{dice_loss_pallas.1} parent=0 // loop_header
    %s8 = sphi 0, %s12
    %p9 = scmp.ge.s32.totalorder %s8, 4
    %s15 = sphi 0, %s27
    %s16 = sphi 0, %s23
    %s17 = sphi 0, %s15
    %s18 = sphi 0, %s16
    %s19 = sphi 0, %s17
    %s20 = sphi 0, %s18
    %s32 = sphi 0, %s34
    %s35 = sphi 0, %s32
    %s36 = sphi 0, %s35
    %s52 = sphi 0, %s36
    %s60 = sphi 0, %s62
    %s63 = sphi 0, %s60
    %s64 = sphi 0, %s63
    %s80 = sphi 0, %s64
    %s88 = sphi 0, %s90
    %s91 = sphi 0, %s88
    %s92 = sphi 0, %s91
    %s108 = sphi 0, %s92
  $region4: #{dice_loss_pallas.1} parent=0 // loop_header_branch
    %11 = sbr.rel (%p9) target = $region8
  $region5: #{dice_loss_pallas.1} parent=0 // loop_body
    %s13 = ssub.s32 %s8, 1
    %s14 = ssub.s32 %s8, 2
    %s21 = sadd.s32 1, %s16
    %p22 = scmp.ge.s32.totalorder %s21, 1
    %s23 = scalar_select %p22, 0, %s21
    %s24 = sadd.s32 1, %s15
    %s25 = scalar_select %p22, %s24, %s15
    %p26 = scmp.ge.s32.totalorder %s25, 2
    %s27 = scalar_select %p26, 0, %s25
    %s28 = ssub.s32 %s15, %s27
    %s29 = ssub.s32 %s16, %s23
    %s30 = sor.u32 %s28, %s29
    %p31 = scmp.eq.s32.totalorder %s30, 0
    %s33 = sadd.s32 %s32, 1
    %s34 = scalar_select %p31, %s32, %s33
    %p37 = pneg %p31
    %p38 = scmp.eq.s32.totalorder %s8, 1
    %p39 = por %p37, %p38
    %p40 = scmp.ne.s32.totalorder %s32, %s35
    %p41 = scmp.eq.s32.totalorder %s8, 0
    %p42 = por %p40, %p41
    %p43 = scmp.ne.s32.totalorder %s32, %s35
    %p44 = scmp.eq.s32.totalorder %s13, 1
    %p45 = por %p43, %p44
    %p46 = scmp.ne.s32.totalorder %s35, %s36
    %p47 = scmp.eq.s32.totalorder %s13, 0
    %p48 = por %p46, %p47
    %p49 = scmp.ne.s32.totalorder %s35, %s36
    %p50 = scmp.eq.s32.totalorder %s14, 1
    %p51 = por %p49, %p50
    %p53 = scmp.ne.s32.totalorder %s36, %s52
    %p54 = scmp.eq.s32.totalorder %s14, 0
    %p55 = por %p53, %p54
    %s56 = ssub.s32 %s15, %s27
    %s57 = ssub.s32 %s16, %s23
    %s58 = sor.u32 %s56, %s57
    %p59 = scmp.eq.s32.totalorder %s58, 0
    %s61 = sadd.s32 %s60, 1
    %s62 = scalar_select %p59, %s60, %s61
    %p65 = pneg %p59
    %p66 = scmp.eq.s32.totalorder %s8, 1
    %p67 = por %p65, %p66
    %p68 = scmp.ne.s32.totalorder %s60, %s63
    %p69 = scmp.eq.s32.totalorder %s8, 0
    %p70 = por %p68, %p69
    %p71 = scmp.ne.s32.totalorder %s60, %s63
    %p72 = scmp.eq.s32.totalorder %s13, 1
    %p73 = por %p71, %p72
    %p74 = scmp.ne.s32.totalorder %s63, %s64
    %p75 = scmp.eq.s32.totalorder %s13, 0
    %p76 = por %p74, %p75
    %p77 = scmp.ne.s32.totalorder %s63, %s64
    %p78 = scmp.eq.s32.totalorder %s14, 1
    %p79 = por %p77, %p78
    %p81 = scmp.ne.s32.totalorder %s64, %s80
    %p82 = scmp.eq.s32.totalorder %s14, 0
    %p83 = por %p81, %p82
    %s84 = ssub.s32 %s15, %s27
    %s85 = ssub.s32 %s16, %s23
    %s86 = sor.u32 %s84, %s85
    %p87 = scmp.eq.s32.totalorder %s86, 0
    %s89 = sadd.s32 %s88, 1
    %s90 = scalar_select %p87, %s88, %s89
    %p93 = pneg %p87
    %p94 = scmp.eq.s32.totalorder %s8, 1
    %p95 = por %p93, %p94
    %p96 = scmp.ne.s32.totalorder %s88, %s91
    %p97 = scmp.eq.s32.totalorder %s8, 0
    %p98 = por %p96, %p97
    %p99 = scmp.ne.s32.totalorder %s88, %s91
    %p100 = scmp.eq.s32.totalorder %s13, 1
    %p101 = por %p99, %p100
    %p102 = scmp.ne.s32.totalorder %s91, %s92
    %p103 = scmp.eq.s32.totalorder %s13, 0
    %p104 = por %p102, %p103
    %p105 = scmp.ne.s32.totalorder %s91, %s92
    %p106 = scmp.eq.s32.totalorder %s14, 1
    %p107 = por %p105, %p106
    %p109 = scmp.ne.s32.totalorder %s92, %s108
    %p110 = scmp.eq.s32.totalorder %s14, 0
    %p111 = por %p109, %p110
    %p112 = scmp.le.s32.totalorder 1, %s8
    %p113 = scmp.lt.s32.totalorder %s8, 3
    %p114 = pnand %p112, %p113
    %p115 = pneg %p114
    // Predicated region
    $region9: #{dice_loss_pallas.1} parent=5 // pred_check
      _
    $region10: #{dice_loss_pallas.1} parent=5 // pred_check_branch
      %117 = sbr.rel (%p114) target = $region12
    $region11: #{dice_loss_pallas.1} parent=5 // pred_region
      %s118 = ssub.s32 %s8, 1
    $region12: #{dice_loss_pallas.1} parent=5 // pred_fallthru
      _
    %p119 = scmp.lt.s32.totalorder %s8, 2
    // Predicated region
    $region13: #{dice_loss_pallas.1} parent=5 // pred_check
      %p120 = pneg %p119
    $region14: #{dice_loss_pallas.1} parent=5 // pred_check_branch
      %122 = sbr.rel (%p120) target = $region16
    $region15: #{dice_loss_pallas.1} parent=5 // pred_region
      // Predicated region
      $region17: #{dice_loss_pallas.1} parent=15 // pred_check
        %p123 = pneg %p42
      $region18: #{dice_loss_pallas.1} parent=15 // pred_check_branch
        %125 = sbr.rel (%p123) target = $region20
      $region19: #{dice_loss_pallas.1} parent=15 // pred_region
        %p126 = scmp.lt.s32.totalorder %s15, 1
        %s127 = scalar_select %p126, %s15, 1
        %p128 = scmp.lt.s32.totalorder %s16, 0
        %s129 = scalar_select %p128, %s16, 0
        %s130 = smul.addr %s127, 4
        %s131 = sadd.s32 %s129, %s130
        %s132 = smul.addr %s131, 2
        %s133 = scalar_lea.vmem %s0, %s132
      $region20: #{dice_loss_pallas.1} parent=15 // pred_fallthru
        _
      // Predicated region
      $region21: #{dice_loss_pallas.1} parent=15 // pred_check
        %p134 = pneg %p70
      $region22: #{dice_loss_pallas.1} parent=15 // pred_check_branch
        %136 = sbr.rel (%p134) target = $region24
      $region23: #{dice_loss_pallas.1} parent=15 // pred_region
        %p137 = scmp.lt.s32.totalorder %s15, 1
        %s138 = scalar_select %p137, %s15, 1
        %p139 = scmp.lt.s32.totalorder %s16, 0
        %s140 = scalar_select %p139, %s16, 0
        %s141 = sadd.s32 %s140, %s138
        %s142 = smul.addr %s141, 2
        %s143 = scalar_lea.vmem %s1, %s142
      $region24: #{dice_loss_pallas.1} parent=15 // pred_fallthru
        _
    $region16: #{dice_loss_pallas.1} parent=5 // pred_fallthru
      _
    %p144 = scmp.le.s32.totalorder 1, %s8
    %p145 = scmp.lt.s32.totalorder %s8, 3
    %p146 = pnand %p144, %p145
    %p147 = pneg %p146
    // Predicated region
    $region25: #{dice_loss_pallas.1} parent=5 // pred_check
      _
    $region26: #{dice_loss_pallas.1} parent=5 // pred_check_branch
      %149 = sbr.rel (%p146) target = $region28
    $region27: #{dice_loss_pallas.1} parent=5 // pred_region
      %s150 = ssub.s32 %s8, 1
      %p151 = scmp.lt.s32.totalorder %s17, 1
      %s152 = scalar_select %p151, %s17, 1
      %p153 = scmp.lt.s32.totalorder %s18, 0
      %s154 = scalar_select %p153, %s18, 0
      %s155 = smul.addr %s152, 4
      %s156 = sadd.s32 %s154, %s155
      %s157 = smul.addr %s156, 2
      %s158 = scalar_lea.vmem %s0, %s157
      %p159 = pneg %p48
      %p160 = pneg %p45
      %p161 = scmp.lt.s32.totalorder %s17, 1
      %s162 = scalar_select %p161, %s17, 1
      %p163 = scmp.lt.s32.totalorder %s18, 0
      %s164 = scalar_select %p163, %s18, 0
      %s165 = sadd.s32 %s164, %s162
      %s166 = smul.addr %s165, 2
      %s167 = scalar_lea.vmem %s1, %s166
      %p168 = pneg %p76
      %p169 = pneg %p73
      %p170 = pneg %p104
      %p171 = pneg %p101
      %p172 = scmp.lt.s32.totalorder %s17, 1
      %s173 = scalar_select %p172, %s17, 1
      %p174 = scmp.lt.s32.totalorder %s18, 0
      %s175 = scalar_select %p174, %s18, 0
      %s176 = smul.addr %s175, 2
      %s177 = smul.addr %s173, 2
      %s178 = sadd.s32 %s176, %s177
      %s179 = smul.addr %s178, 8
      %s180 = scalar_lea.vmem %s2, %s179
      %p181 = scmp.lt.s32.totalorder %s17, 1
      %s182 = scalar_select %p181, %s17, 1
      %p183 = scmp.lt.s32.totalorder %s18, 0
      %s184 = scalar_select %p183, %s18, 0
      %s185 = smul.addr %s182, 4
      %s186 = sadd.s32 %s184, %s185
      %s187 = smul.addr %s186, 2
      %s188 = scalar_lea.vmem %s0, %s187
      %p189 = scmp.lt.s32.totalorder %s17, 1
      %s190 = scalar_select %p189, %s17, 1
      %p191 = scmp.lt.s32.totalorder %s18, 0
      %s192 = scalar_select %p191, %s18, 0
      %s193 = sadd.s32 %s192, %s190
      %s194 = smul.addr %s193, 2
      %s195 = scalar_lea.vmem %s1, %s194
      %p196 = scmp.lt.s32.totalorder %s17, 1
      %s197 = scalar_select %p196, %s17, 1
      %p198 = scmp.lt.s32.totalorder %s18, 0
      %s199 = scalar_select %p198, %s18, 0
      %s200 = smul.addr %s199, 2
      %s201 = smul.addr %s197, 2
      %s202 = sadd.s32 %s200, %s201
      %s203 = smul.addr %s202, 8
      %s204 = scalar_lea.vmem %s2, %s203
      %v205 = vld [vmem:[%s188] sm:$0x3]
      %v206 = vld [vmem:[%s188 + $0x2] sm:$0x3]
      %v207 = vld [vmem:[%s188 + $0x4] sm:$0x3]
      %v208 = vld [vmem:[%s188 + $0x6] sm:$0x3]
      %v209 = vld [vmem:[%s195] sm:$0x3]
      %vm210 = vcmask 1041408
      %v211 = vsel %vm210, %v205, -inf
      %v212 = vsel %vm210, %v206, -inf
      %v213 = vsel %vm210, %v207, -inf
      %v214 = vsel %vm210, %v208, -inf
      %v215 = vmax.f32 %v211, %v212
      %v216 = vmax.f32 %v213, %v214
      %v217 = vmax.f32 %v215, %v216
      %v218 = vsub.f32 %v205, %v217
      %v219 = vsub.f32 %v206, %v217
      %v220 = vsub.f32 %v207, %v217
      %v221 = vsub.f32 %v208, %v217
      %v222 = vmul.f32 %v218, 1.442695
      %v223 = vpow.pop %v222
      %v224 = vmul.f32 %v219, 1.442695
      %v225 = vpow.pop %v224
      %v226 = vmul.f32 %v220, 1.442695
      %v227 = vpow.pop %v226
      %v228 = vmul.f32 %v221, 1.442695
      %v229 = vpow.pop %v228
      %v230 = vsel %vm210, %v223, 0.0
      %v231 = vsel %vm210, %v225, 0.0
      %v232 = vadd.f32 %v230, %v231
      %v233 = vsel %vm210, %v227, 0.0
      %v234 = vadd.f32 %v232, %v233
      %v235 = vsel %vm210, %v229, 0.0
      %v236 = vadd.f32 %v234, %v235
      %v237 = vrcp.pop %v236
      %v238 = vmul.f32 %v236, %v237
      %v239 = vsub.f32 1.0, %v238
      %v240 = vmul.f32 %v237, %v239
      %v241 = vadd.f32 %v237, %v240
      %vm242 = vweird.f32 %v236
      %vm243 = vweird.f32 %v237
      %vm244 = vmor %vm242, %vm243
      %v245 = vsel %vm244, %v237, %v241
      %v246 = vand.u32 2147483647, %v236
      %vm247 = vcmp.eq.f32.partialorder %v246, 8.507059e+37
      %v248 = vand.u32 %v236, 2147483648
      %v249 = vor.u32 1.1754944e-38, %v248
      %v250 = vsel %vm247, %v249, %v245
      %v251 = vmul.f32 1.0, %v250
      %v252 = vmul.f32 %v223, %v251
      %v253 = vmul.f32 %v225, %v251
      %v254 = vmul.f32 %v227, %v251
      %v255 = vmul.f32 %v229, %v251
      %vm256 = vcmp.eq.s32.totalorder %v209, 0
      %v257 = vsel %vm256, %v252, 0.0
      %v258 = vsel %vm210, %v257, 0.0
      %v259 = vrot.slane %v258, 4
      %v260 = vadd.f32 %v258, %v259
      %v261 = vrot.slane %v260, 2
      %v262 = vadd.f32 %v260, %v261
      %v263 = vrot.slane %v262, 1
      %v264 = vadd.f32 %v262, %v263
      %v265 = vsel %vm256, 1.0, 0.0
      %v266 = vsel %vm210, %v265, 0.0
      %v267 = vrot.slane %v266, 4
      %v268 = vadd.f32 %v266, %v267
      %v269 = vrot.slane %v268, 2
      %v270 = vadd.f32 %v268, %v269
      %v271 = vrot.slane %v270, 1
      %v272 = vadd.f32 %v270, %v271
      %v273 = vmul.f32 %v252, %v252
      %v274 = vsel %vm210, %v273, 0.0
      %v275 = vrot.slane %v274, 4
      %v276 = vadd.f32 %v274, %v275
      %v277 = vrot.slane %v276, 2
      %v278 = vadd.f32 %v276, %v277
      %v279 = vrot.slane %v278, 1
      %v280 = vadd.f32 %v278, %v279
      %vm281 = vcmp.eq.s32.totalorder %v209, 1
      %v282 = vsel %vm281, %v253, 0.0
      %v283 = vsel %vm210, %v282, 0.0
      %v284 = vrot.slane %v283, 4
      %v285 = vadd.f32 %v283, %v284
      %v286 = vrot.slane %v285, 2
      %v287 = vadd.f32 %v285, %v286
      %v288 = vrot.slane %v287, 1
      %v289 = vadd.f32 %v287, %v288
      %v290 = vsel %vm281, 1.0, 0.0
      %v291 = vsel %vm210, %v290, 0.0
      %v292 = vrot.slane %v291, 4
      %v293 = vadd.f32 %v291, %v292
      %v294 = vrot.slane %v293, 2
      %v295 = vadd.f32 %v293, %v294
      %v296 = vrot.slane %v295, 1
      %v297 = vadd.f32 %v295, %v296
      %v298 = vmul.f32 %v253, %v253
      %v299 = vsel %vm210, %v298, 0.0
      %v300 = vrot.slane %v299, 4
      %v301 = vadd.f32 %v299, %v300
      %v302 = vrot.slane %v301, 2
      %v303 = vadd.f32 %v301, %v302
      %v304 = vrot.slane %v303, 1
      %v305 = vadd.f32 %v303, %v304
      %vm306 = vcmp.eq.s32.totalorder %v209, 2
      %v307 = vsel %vm306, %v254, 0.0
      %v308 = vsel %vm210, %v307, 0.0
      %v309 = vrot.slane %v308, 4
      %v310 = vadd.f32 %v308, %v309
      %v311 = vrot.slane %v310, 2
      %v312 = vadd.f32 %v310, %v311
      %v313 = vrot.slane %v312, 1
      %v314 = vadd.f32 %v312, %v313
      %v315 = vsel %vm306, 1.0, 0.0
      %v316 = vsel %vm210, %v315, 0.0
      %v317 = vrot.slane %v316, 4
      %v318 = vadd.f32 %v316, %v317
      %v319 = vrot.slane %v318, 2
      %v320 = vadd.f32 %v318, %v319
      %v321 = vrot.slane %v320, 1
      %v322 = vadd.f32 %v320, %v321
      %v323 = vmul.f32 %v254, %v254
      %v324 = vsel %vm210, %v323, 0.0
      %v325 = vrot.slane %v324, 4
      %v326 = vadd.f32 %v324, %v325
      %v327 = vrot.slane %v326, 2
      %v328 = vadd.f32 %v326, %v327
      %v329 = vrot.slane %v328, 1
      %v330 = vadd.f32 %v328, %v329
      %vm331 = vcmp.eq.s32.totalorder %v209, 3
      %v332 = vsel %vm331, %v255, 0.0
      %v333 = vsel %vm210, %v332, 0.0
      %v334 = vrot.slane %v333, 4
      %v335 = vadd.f32 %v333, %v334
      %v336 = vrot.slane %v335, 2
      %v337 = vadd.f32 %v335, %v336
      %v338 = vrot.slane %v337, 1
      %v339 = vadd.f32 %v337, %v338
      %v340 = vsel %vm331, 1.0, 0.0
      %v341 = vsel %vm210, %v340, 0.0
      %v342 = vrot.slane %v341, 4
      %v343 = vadd.f32 %v341, %v342
      %v344 = vrot.slane %v343, 2
      %v345 = vadd.f32 %v343, %v344
      %v346 = vrot.slane %v345, 1
      %v347 = vadd.f32 %v345, %v346
      %v348 = vmul.f32 %v255, %v255
      %v349 = vsel %vm210, %v348, 0.0
      %v350 = vrot.slane %v349, 4
      %v351 = vadd.f32 %v349, %v350
      %v352 = vrot.slane %v351, 2
      %v353 = vadd.f32 %v351, %v352
      %v354 = vrot.slane %v353, 1
      %v355 = vadd.f32 %v353, %v354
      %vm356 = vcmask 1040384
      %v357 = vsel %vm356, %v264, %v289
      %v358 = vsel %vm210, %v357, %v314
      %vm359 = vcmask 1042432
      %v360 = vsel %vm359, %v358, %v339
      %vm361 = vcmask 1043456
      %v362 = vsel %vm361, %v360, %v272
      %vm363 = vcmask 1044480
      %v364 = vsel %vm363, %v362, %v297
      %vm365 = vcmask 1045504
      %v366 = vsel %vm365, %v364, %v322
      %vm367 = vcmask 1046528
      %v368 = vsel %vm367, %v366, %v347
      %v369 = vsel %vm356, %v280, %v305
      %v370 = vsel %vm210, %v369, %v330
      %v371 = vsel %vm359, %v370, %v355
      %372 = vst [vmem:[%s204] sm:$0xff] %v368
      %373 = vst [vmem:[%s204 + $0x8] sm:$0xf] %v371
      %p374 = scmp.lt.s32.totalorder %s17, 1
      %s375 = scalar_select %p374, %s17, 1
      %p376 = scmp.lt.s32.totalorder %s18, 0
      %s377 = scalar_select %p376, %s18, 0
      %s378 = smul.addr %s377, 2
      %s379 = smul.addr %s375, 2
      %s380 = sadd.s32 %s378, %s379
      %s381 = smul.addr %s380, 8
      %s382 = scalar_lea.vmem %s2, %s381
      // Predicated region
      $region29: #{dice_loss_pallas.1} parent=27 // pred_check
        %p383 = pneg %p101
      $region30: #{dice_loss_pallas.1} parent=27 // pred_check_branch
        %385 = sbr.rel (%p383) target = $region32
      $region31: #{dice_loss_pallas.1} parent=27 // pred_region
        _
      $region32: #{dice_loss_pallas.1} parent=27 // pred_fallthru
        _
    $region28: #{dice_loss_pallas.1} parent=5 // pred_fallthru
      _
    %p386 = scmp.le.s32.totalorder 2, %s8
    // Predicated region
    $region33: #{dice_loss_pallas.1} parent=5 // pred_check
      %p387 = pneg %p386
    $region34: #{dice_loss_pallas.1} parent=5 // pred_check_branch
      %389 = sbr.rel (%p387) target = $region36
    $region35: #{dice_loss_pallas.1} parent=5 // pred_region
      %s390 = ssub.s32 %s8, 2
      // Predicated region
      $region37: #{dice_loss_pallas.1} parent=35 // pred_check
        %p391 = pneg %p107
      $region38: #{dice_loss_pallas.1} parent=35 // pred_check_branch
        %393 = sbr.rel (%p391) target = $region40
      $region39: #{dice_loss_pallas.1} parent=35 // pred_region
        %p394 = scmp.lt.s32.totalorder %s19, 1
        %s395 = scalar_select %p394, %s19, 1
        %p396 = scmp.lt.s32.totalorder %s20, 0
        %s397 = scalar_select %p396, %s20, 0
        %s398 = smul.addr %s397, 2
        %s399 = smul.addr %s395, 2
        %s400 = sadd.s32 %s398, %s399
        %s401 = smul.addr %s400, 8
        %s402 = scalar_lea.vmem %s2, %s401
      $region40: #{dice_loss_pallas.1} parent=35 // pred_fallthru
        _
    $region36: #{dice_loss_pallas.1} parent=5 // pred_fallthru
      _
  $region6: #{dice_loss_pallas.1} parent=0 // loop_footer
    %s12 = sadd.s32 1, %s8
  $region7: #{dice_loss_pallas.1} parent=0 // loop_footer_branch
    %7 = sbr.rel target = $region3
  $region8: #{dice_loss_pallas.1} parent=0 // loop_exit
    _

</llo_original>
